<compile_context>
chip_gen: v6e
topology: v6e:2x2x1
jax: 0.10.0
libtpu: 0.0.40
codegen_flags: <defaults>
</compile_context>

<pallas_src>
import functools

import jax
import jax.numpy as jnp
import numpy as np
from jax import lax
from jax.experimental import pallas as pl
from jax.experimental.pallas import tpu as pltpu


def _bilinear_matrix(out_size: int, in_size: int, scale: float,
                     align_corners: bool) -> np.ndarray:
    """Dense (out_size, in_size) 1-D bilinear interpolation matrix.

    Matches torch.nn.functional.interpolate(mode='bilinear') coordinate
    semantics (half-pixel when align_corners=False).
    """
    m = np.zeros((out_size, in_size), dtype=np.float32)
    for i in range(out_size):
        if align_corners:
            src = 0.0 if out_size == 1 else i * (in_size - 1) / (out_size - 1)
        else:
            src = (i + 0.5) / scale - 0.5
            src = min(max(src, 0.0), in_size - 1)
        i0 = int(np.floor(src))
        i0 = min(max(i0, 0), in_size - 1)
        i1 = min(i0 + 1, in_size - 1)
        w1 = src - i0
        m[i, i0] += 1.0 - w1
        m[i, i1] += w1
    return m


def _round_up(x: int, m: int) -> int:
    return (x + m - 1) // m * m


def _tile_bytes(rows: int, cols: int, itemsize: int) -> int:
    """Approx VMEM footprint of a (rows, cols) tile incl. (sublane, 128) padding."""
    sublane = max(1, 32 // itemsize)
    return _round_up(rows, sublane) * _round_up(cols, 128) * itemsize


def _choose_chunk(bc: int, h_in: int, h_out: int, sublane: int,
                  target_rows: int = 256, max_slices: int = 16) -> int:
    """Slices per inner chunk: boundaries sublane-aligned, ~target_rows rows of
    W-pass M, at most max_slices slices (bounds the unrolled H-pass)."""
    best = bc
    for d in range(1, bc + 1):
        if bc % d:
            continue
        if d != bc and ((d * h_in) % sublane or (d * h_out) % sublane):
            continue
        if d <= max_slices:
            best = d
            if d * h_in >= target_rows:
                return d
    return best


def _choose_block_channels(nc, h_in, w_in, h_out, w_out,
                           itemsize, mat_itemsize, budget):
    """Channel batch BC (divisor of nc): double-buffered working set fits
    `budget`, rows sublane-aligned, preferring >=4 grid steps and an even grid
    (v7x megacore), then the largest BC (longest contiguous DMA slab)."""
    sublane = max(1, 32 // itemsize)

    def aligned(bc):
        # full-array block is always layout-legal
        return bc == nc or ((bc * h_in) % sublane == 0
                            and (bc * h_out) % sublane == 0)

    def fits(bc):
        chunk = _choose_chunk(bc, h_in, h_out, sublane)
        x_blk = _tile_bytes(bc * h_in, w_in, itemsize)
        o_blk = _tile_bytes(bc * h_out, w_out, itemsize)
        mats = (_tile_bytes(h_out, h_in, 4)
                + _tile_bytes(w_in, w_out, mat_itemsize))
        t_blk = _tile_bytes(chunk * h_in, w_out, 4)   # f32 W-pass intermediate
        hb_blk = _tile_bytes(h_out, w_out, 4)         # f32 per-slice H-pass result
        # 2x: double-buffered pipelined arrays; 2x margin on compiler temporaries.
        return 2 * (x_blk + o_blk + mats) + 2 * (t_blk + hb_blk) <= budget

    divisors = [d for d in range(1, nc + 1) if nc % d == 0]
    candidates = [d for d in divisors if aligned(d)]
    valid = [d for d in candidates if fits(d)]
    if not valid:
        # "Nothing fits" fallback: smallest legal block, never the full array.
        return min(candidates)

    def score(d):
        steps = nc // d
        return (steps >= 4, steps % 2 == 0, d)

    return max(valid, key=score)


def _interp_kernel(x_ref, bt_ref, a_ref, o_ref, *, chunk, n_chunks, h_in, h_out):
    # x_ref:  (BC*H_in,  W_in)   BC stacked (n, c) spatial slices
    # bt_ref: (W_in,  W_out)     transposed column-interpolation matrix (x dtype)
    # a_ref:  (H_out, H_in)      row-interpolation matrix (f32)
    # o_ref:  (BC*H_out, W_out)
    bt = bt_ref[...]
    a = a_ref[...]
    rows_in = chunk * h_in
    rows_out = chunk * h_out

    def do_chunk(in_off, out_off):
        # W-pass: one matmul for the whole chunk (M = chunk*h_in), f32 accumulate.
        t = jnp.dot(x_ref[pl.ds(in_off, rows_in), :], bt,
                    preferred_element_type=jnp.float32)
        # H-pass per slice (block-diagonal); chunk is small, static unroll is cheap.
        # t stays f32 through the H-pass (no bf16 double-rounding).
        for b in range(chunk):
            tb = t[b * h_in:(b + 1) * h_in, :]
            ob = jnp.dot(a, tb, preferred_element_type=jnp.float32)
            o_ref[pl.ds(out_off + b * h_out, h_out), :] = ob.astype(o_ref.dtype)

    if n_chunks == 1:
        do_chunk(0, 0)
    else:
        def body(ci, carry):
            do_chunk(pl.multiple_of(ci * rows_in, rows_in),
                     pl.multiple_of(ci * rows_out, rows_out))
            return carry
        lax.fori_loop(0, n_chunks, body, 0, unroll=False)


@functools.partial(jax.jit, static_argnames=("scale_factor", "mode", "align_corners"))
def interpolate(x, *, scale_factor=2, mode="bilinear", align_corners=False):
    """Pallas equivalent of Interpolate(scale_factor, mode, align_corners)(x).

    x: (N, C, H, W)  ->  (N, C, H*scale, W*scale)
    """
    assert mode == "bilinear", "only bilinear mode implemented"
    n, c, h_in, w_in = x.shape
    h_out = int(round(h_in * scale_factor))
    w_out = int(round(w_in * scale_factor))
    nc = n * c

    # W-pass operand matches x dtype (0.25/0.75 exact in bf16/f16); H-pass
    # matrix stays f32 so accumulation is f32 end-to-end.
    low_precision = (jnp.issubdtype(x.dtype, jnp.floating)
                     and jnp.dtype(x.dtype).itemsize < 4)
    bt_dtype = x.dtype if low_precision else jnp.float32
    a = jnp.asarray(_bilinear_matrix(h_out, h_in, scale_factor, align_corners),
                    dtype=jnp.float32)
    bt = jnp.asarray(_bilinear_matrix(w_out, w_in, scale_factor, align_corners).T,
                     dtype=bt_dtype)

    # Generation-aware VMEM budget (v7x: 64 MiB/TC; v5e/v6e: 128 MiB).
    try:
        vmem_cap = int(pltpu.get_tpu_info().vmem_capacity_bytes)
    except Exception:
        vmem_cap = 64 * 1024 * 1024
    if vmem_cap >= 128 * 1024 * 1024:
        vmem_limit = 112 * 1024 * 1024          # be less conservative on v5e/v6e
    else:
        vmem_limit = (vmem_cap * 3) // 4        # v7x: keep headroom under 64 MiB
    budget = vmem_limit - 4 * 1024 * 1024       # slack for compiler-internal scratch

    itemsize = jnp.dtype(x.dtype).itemsize
    mat_itemsize = jnp.dtype(bt_dtype).itemsize
    sublane = max(1, 32 // itemsize)

    bc = _choose_block_channels(nc, h_in, w_in, h_out, w_out,
                                itemsize, mat_itemsize, budget)
    chunk = _choose_chunk(bc, h_in, h_out, sublane)
    n_chunks = bc // chunk
    grid = nc // bc

    # Free row-major 2-D views (no HBM data movement): each grid step DMAs one
    # contiguous slab of BC slices, and stores keep native NCHW layout.
    x2 = x.reshape(nc * h_in, w_in)

    flops = 2 * nc * w_out * h_in * (w_in + h_out)
    bytes_accessed = (nc * (h_in * w_in + h_out * w_out) * itemsize
                      + a.size * 4 + bt.size * mat_itemsize)

    out2 = pl.pallas_call(
        functools.partial(_interp_kernel, chunk=chunk, n_chunks=n_chunks,
                          h_in=h_in, h_out=h_out),
        out_shape=jax.ShapeDtypeStruct((nc * h_out, w_out), x.dtype),
        grid_spec=pltpu.PrefetchScalarGridSpec(
            num_scalar_prefetch=0,
            grid=(grid,),
            in_specs=[
                pl.BlockSpec((bc * h_in, w_in), lambda g: (g, 0)),
                pl.BlockSpec((w_in, w_out), lambda g: (0, 0)),   # constant, DMA'd once
                pl.BlockSpec((h_out, h_in), lambda g: (0, 0)),   # constant, DMA'd once
            ],
            # Note: w_out < 128 (deepest levels) means masked vst + lane padding;
            # accepted here since the HBM DMA remains contiguous.
            out_specs=pl.BlockSpec((bc * h_out, w_out), lambda g: (g, 0)),
        ),
        compiler_params=pltpu.CompilerParams(
            dimension_semantics=("parallel",),
            vmem_limit_bytes=int(vmem_limit)),
        cost_estimate=pl.CostEstimate(flops=int(flops), transcendentals=0,
                                      bytes_accessed=int(bytes_accessed)),
    )(x2, bt, a)

    return out2.reshape(n, c, h_out, w_out)


def _reference(x, *, scale_factor=2, align_corners=False):
    """Pure-JAX reference using the same separable formulation (f32 accumulation)."""
    n, c, h_in, w_in = x.shape
    h_out = int(round(h_in * scale_factor))
    w_out = int(round(w_in * scale_factor))
    a = jnp.asarray(_bilinear_matrix(h_out, h_in, scale_factor, align_corners))
    b = jnp.asarray(_bilinear_matrix(w_out, w_in, scale_factor, align_corners))
    return jnp.einsum("op,ncpq,wq->ncow", a, x.astype(jnp.float32), b).astype(x.dtype)


if __name__ == "__main__":
    key = jax.random.PRNGKey(0)
    x = jax.random.normal(key, (2, 4, 16, 16), dtype=jnp.float32)

    out = interpolate(x, scale_factor=2, mode="bilinear", align_corners=False)
    out = jax.block_until_ready(out)
    assert out.shape == (2, 4, 32, 32), out.shape

    ref = _reference(x, scale_factor=2, align_corners=False)
    np.testing.assert_allclose(np.asarray(out), np.asarray(ref),
                               rtol=1e-4, atol=1e-5)

    # bf16 tolerance check (f32-accumulated H-pass; only input rounding + final cast).
    x_bf = x.astype(jnp.bfloat16)
    out_bf = jax.block_until_ready(
        interpolate(x_bf, scale_factor=2, mode="bilinear", align_corners=False))
    ref_bf = _reference(x_bf, scale_factor=2, align_corners=False)
    np.testing.assert_allclose(np.asarray(out_bf, dtype=np.float32),
                               np.asarray(ref_bf, dtype=np.float32),
                               rtol=2e-2, atol=2e-2)

    print("KERNEL_OK")
</pallas_src>

<mosaic_0001>
module attributes {stable_mosaic.version = 11 : i64} {
  func.func @_interp_kernel(%arg0: i32, %arg1: memref<32x16xf32, #tpu.memory_space<vmem>>, %arg2: memref<16x32xf32, #tpu.memory_space<vmem>>, %arg3: memref<32x16xf32, #tpu.memory_space<vmem>>, %arg4: memref<64x32xf32, #tpu.memory_space<vmem>>) attributes {dimension_semantics = [#tpu.dimension_semantics<parallel>], iteration_bounds = array<i64: 4>, scalar_prefetch = 0 : i64, scratch_operands = 0 : i64, tpu.core_type = #tpu.core_type<tc>, window_params = [{transform_indices = @transform_0, window_bounds = array<i64: 32, 16>}, {pipeline_mode = #tpu.pipeline_mode<synchronous>, transform_indices = @transform_1, window_bounds = array<i64: 16, 32>}, {pipeline_mode = #tpu.pipeline_mode<synchronous>, transform_indices = @transform_2, window_bounds = array<i64: 32, 16>}, {transform_indices = @transform_3, window_bounds = array<i64: 64, 32>}]} {
    %c0 = arith.constant 0 : index
    %c0_0 = arith.constant 0 : index
    %0 = vector.load %arg2[%c0, %c0_0] : memref<16x32xf32, #tpu.memory_space<vmem>>, vector<16x32xf32>
    %c0_1 = arith.constant 0 : index
    %c0_2 = arith.constant 0 : index
    %1 = vector.load %arg3[%c0_1, %c0_2] : memref<32x16xf32, #tpu.memory_space<vmem>>, vector<32x16xf32>
    %c0_3 = arith.constant 0 : index
    %c0_4 = arith.constant 0 : index
    %2 = vector.load %arg1[%c0_3, %c0_4] : memref<32x16xf32, #tpu.memory_space<vmem>>, vector<32x16xf32>
    %cst = arith.constant dense<0.000000e+00> : vector<32x32xf32>
    %3 = tpu.matmul %2, %0, %cst {dimension_numbers = #tpu.dot_dimension_numbers<[1], [0], [0], [1], [0, 0, 1, 1], [], []>} : vector<32x16xf32>, vector<16x32xf32>, vector<32x32xf32> -> vector<32x32xf32>
    %4 = vector.extract_strided_slice %3 {offsets = [0, 0], sizes = [16, 32], strides = [1, 1]} : vector<32x32xf32> to vector<16x32xf32>
    %cst_5 = arith.constant dense<0.000000e+00> : vector<32x32xf32>
    %5 = tpu.matmul %1, %4, %cst_5 {dimension_numbers = #tpu.dot_dimension_numbers<[1], [0], [0], [1], [0, 0, 1, 1], [], []>} : vector<32x16xf32>, vector<16x32xf32>, vector<32x32xf32> -> vector<32x32xf32>
    %c0_6 = arith.constant 0 : index
    %c0_7 = arith.constant 0 : index
    %6 = vector.load %arg4[%c0_6, %c0_7] : memref<64x32xf32, #tpu.memory_space<vmem>>, vector<32x32xf32>
    tpu.vector_store %arg4[%c0_6, %c0_7], %5 {strides = array<i32>} : memref<64x32xf32, #tpu.memory_space<vmem>>, vector<32x32xf32>,
    %7 = vector.extract_strided_slice %3 {offsets = [16, 0], sizes = [16, 32], strides = [1, 1]} : vector<32x32xf32> to vector<16x32xf32>
    %cst_8 = arith.constant dense<0.000000e+00> : vector<32x32xf32>
    %8 = tpu.matmul %1, %7, %cst_8 {dimension_numbers = #tpu.dot_dimension_numbers<[1], [0], [0], [1], [0, 0, 1, 1], [], []>} : vector<32x16xf32>, vector<16x32xf32>, vector<32x32xf32> -> vector<32x32xf32>
    %c32 = arith.constant 32 : index
    %c0_9 = arith.constant 0 : index
    %9 = vector.load %arg4[%c32, %c0_9] : memref<64x32xf32, #tpu.memory_space<vmem>>, vector<32x32xf32>
    tpu.vector_store %arg4[%c32, %c0_9], %8 {strides = array<i32>} : memref<64x32xf32, #tpu.memory_space<vmem>>, vector<32x32xf32>,
    return
  }
  func.func @transform_0(%arg0: i32) -> (i32, i32) {
    %c0_i32 = arith.constant 0 : i32
    %c0_i32_0 = arith.constant 0 : i32
    return %arg0, %c0_i32 : i32, i32
  }
  func.func @transform_1(%arg0: i32) -> (i32, i32) {
    %c0_i32 = arith.constant 0 : i32
    %c0_i32_0 = arith.constant 0 : i32
    %c0_i32_1 = arith.constant 0 : i32
    return %c0_i32, %c0_i32_0 : i32, i32
  }
  func.func @transform_2(%arg0: i32) -> (i32, i32) {
    %c0_i32 = arith.constant 0 : i32
    %c0_i32_0 = arith.constant 0 : i32
    %c0_i32_1 = arith.constant 0 : i32
    return %c0_i32, %c0_i32_0 : i32, i32
  }
  func.func @transform_3(%arg0: i32) -> (i32, i32) {
    %c0_i32 = arith.constant 0 : i32
    %c0_i32_0 = arith.constant 0 : i32
    return %arg0, %c0_i32 : i32, i32
  }
}

</mosaic_0001>

<llo_original>
// kernel: interpolate.1
$region0: #{interpolate.1}
  #allocation0 [shape = 'u32[]', space=smem, size = 0x4, offset = 0x4, fixed_abs, tag = 'smem constant byte address 0x4 - core index']
  #allocation1 [shape = 'u32[144,128]{1,0:T(1,128)}', space=vmem, size = 0x12000, scoped, tag = 'internal scratch']
  %s0 = inlined_call_operand.hbm [shape: f32[128,16], index: 0, kind: input, shape index: {}]
  %s1 = inlined_call_operand.hbm [shape: f32[16,32], index: 1, kind: input, shape index: {}]
  %s2 = inlined_call_operand.hbm [shape: f32[32,16], index: 2, kind: input, shape index: {}]
  %s3 = inlined_call_operand.hbm [shape: f32[256,32], index: 3, kind: output, shape index: {}]
  %s4 = sld [smem:[#allocation0]]
  $region57: #{interpolate.1} parent=0
    _
  %s6 = ssub.s32 1, %s4
  %s7 = scalar_select 0, %s6, %s4
  $region1: #{interpolate.1} parent=0
    #allocation2 [shape = 'u8[32768]{0}', space=vmem, size = 0x8000, scoped, tag = 'input window, operand 0']
    #allocation3 [shape = 's32[2]{0}', space=sflag, size = 0x8, scoped, tag = 'scoped memory for interpolate.1']
    #allocation4 [shape = 's32[2]{0}', space=sflag, size = 0x8, scoped, tag = 'scoped memory for interpolate.1']
    #allocation5 [shape = 'u8[8192]{0}', space=vmem, size = 0x2000, scoped, tag = 'input window, operand 1, single buffered']
    #allocation6 [shape = 's32[1]{0}', space=sflag, size = 0x4, scoped, tag = 'scoped memory for interpolate.1']
    #allocation7 [shape = 'u8[16384]{0}', space=vmem, size = 0x4000, scoped, tag = 'input window, operand 2, single buffered']
    #allocation8 [shape = 'u8[65536]{0}', space=vmem, size = 0x10000, scoped, tag = 'output window, operand 0']
    %8 = vsyncpa [#allocation3], 0
    %s9 = scalar_lea.sflag [#allocation3], 1
    %10 = vsyncpa %s9, 0
    %11 = vsyncpa [#allocation6], 0
    %12 = vsyncpa [#allocation4], 0
    %s13 = scalar_lea.sflag [#allocation4], 1
    %14 = vsyncpa %s13, 0
    loop: start=0, step=1, limit=6
    $region2: #{interpolate.1} parent=1 // loop_pre_header
      _
    $region3: #{interpolate.1} parent=1 // loop_header
      %s16 = sphi 0, %s20
      %p17 = scmp.ge.s32.totalorder %s16, 6
      %s26 = sphi 0, %s28
      %s29 = sphi 0, %s26
      %s30 = sphi 0, %s29
      %s46 = sphi 0, %s30
      %s50 = sphi 0, %s50
      %s52 = sphi 0, %s50
      %s53 = sphi 0, %s52
      %s67 = sphi 0, %s53
      %s71 = sphi 0, %s71
      %s73 = sphi 0, %s71
      %s74 = sphi 0, %s73
      %s88 = sphi 0, %s74
      %s94 = sphi 0, %s96
      %s97 = sphi 0, %s94
      %s98 = sphi 0, %s97
      %s114 = sphi 0, %s98
    $region4: #{interpolate.1} parent=1 // loop_header_branch
      %19 = sbr.rel (%p17) target = $region8
    $region5: #{interpolate.1} parent=1 // loop_body
      %s21 = ssub.s32 %s16, 1
      %s22 = ssub.s32 %s16, 2
      %s23 = sadd.s32 %s16, 1
      %s24 = ssub.s32 %s16, %s23
      %p25 = scmp.eq.s32.totalorder %s24, 0
      %s27 = sadd.s32 %s26, 1
      %s28 = scalar_select %p25, %s26, %s27
      %p31 = pneg %p25
      %p32 = scmp.eq.s32.totalorder %s16, 3
      %p33 = por %p31, %p32
      %p34 = scmp.ne.s32.totalorder %s26, %s29
      %p35 = scmp.eq.s32.totalorder %s16, 0
      %p36 = por %p34, %p35
      %p37 = scmp.ne.s32.totalorder %s26, %s29
      %p38 = scmp.eq.s32.totalorder %s21, 3
      %p39 = por %p37, %p38
      %p40 = scmp.ne.s32.totalorder %s29, %s30
      %p41 = scmp.eq.s32.totalorder %s21, 0
      %p42 = por %p40, %p41
      %p43 = scmp.ne.s32.totalorder %s29, %s30
      %p44 = scmp.eq.s32.totalorder %s22, 3
      %p45 = por %p43, %p44
      %p47 = scmp.ne.s32.totalorder %s30, %s46
      %p48 = scmp.eq.s32.totalorder %s22, 0
      %p49 = por %p47, %p48
      %s51 = sadd.s32 %s50, 1
      %p54 = scmp.eq.s32.totalorder %s16, 3
      %p55 = scmp.ne.s32.totalorder %s50, %s52
      %p56 = scmp.eq.s32.totalorder %s16, 0
      %p57 = por %p55, %p56
      %p58 = scmp.ne.s32.totalorder %s50, %s52
      %p59 = scmp.eq.s32.totalorder %s21, 3
      %p60 = por %p58, %p59
      %p61 = scmp.ne.s32.totalorder %s52, %s53
      %p62 = scmp.eq.s32.totalorder %s21, 0
      %p63 = por %p61, %p62
      %p64 = scmp.ne.s32.totalorder %s52, %s53
      %p65 = scmp.eq.s32.totalorder %s22, 3
      %p66 = por %p64, %p65
      %p68 = scmp.ne.s32.totalorder %s53, %s67
      %p69 = scmp.eq.s32.totalorder %s22, 0
      %p70 = por %p68, %p69
      %s72 = sadd.s32 %s71, 1
      %p75 = scmp.eq.s32.totalorder %s16, 3
      %p76 = scmp.ne.s32.totalorder %s71, %s73
      %p77 = scmp.eq.s32.totalorder %s16, 0
      %p78 = por %p76, %p77
      %p79 = scmp.ne.s32.totalorder %s71, %s73
      %p80 = scmp.eq.s32.totalorder %s21, 3
      %p81 = por %p79, %p80
      %p82 = scmp.ne.s32.totalorder %s73, %s74
      %p83 = scmp.eq.s32.totalorder %s21, 0
      %p84 = por %p82, %p83
      %p85 = scmp.ne.s32.totalorder %s73, %s74
      %p86 = scmp.eq.s32.totalorder %s22, 3
      %p87 = por %p85, %p86
      %p89 = scmp.ne.s32.totalorder %s74, %s88
      %p90 = scmp.eq.s32.totalorder %s22, 0
      %p91 = por %p89, %p90
      %s92 = ssub.s32 %s16, %s23
      %p93 = scmp.eq.s32.totalorder %s92, 0
      %s95 = sadd.s32 %s94, 1
      %s96 = scalar_select %p93, %s94, %s95
      %p99 = pneg %p93
      %p100 = scmp.eq.s32.totalorder %s16, 3
      %p101 = por %p99, %p100
      %p102 = scmp.ne.s32.totalorder %s94, %s97
      %p103 = scmp.eq.s32.totalorder %s16, 0
      %p104 = por %p102, %p103
      %p105 = scmp.ne.s32.totalorder %s94, %s97
      %p106 = scmp.eq.s32.totalorder %s21, 3
      %p107 = por %p105, %p106
      %p108 = scmp.ne.s32.totalorder %s97, %s98
      %p109 = scmp.eq.s32.totalorder %s21, 0
      %p110 = por %p108, %p109
      %p111 = scmp.ne.s32.totalorder %s97, %s98
      %p112 = scmp.eq.s32.totalorder %s22, 3
      %p113 = por %p111, %p112
      %p115 = scmp.ne.s32.totalorder %s98, %s114
      %p116 = scmp.eq.s32.totalorder %s22, 0
      %p117 = por %p115, %p116
      %p118 = scmp.le.s32.totalorder 1, %s16
      %p119 = scmp.lt.s32.totalorder %s16, 5
      %p120 = pnand %p118, %p119
      %p121 = pneg %p120
      // Predicated region
      $region9: #{interpolate.1} parent=5 // pred_check
        _
      $region10: #{interpolate.1} parent=5 // pred_check_branch
        %123 = sbr.rel (%p120) target = $region12
      $region11: #{interpolate.1} parent=5 // pred_region
        %s124 = ssub.s32 %s16, 1
        // Predicated region
        $region13: #{interpolate.1} parent=11 // pred_check
          %p125 = pneg %p63
        $region14: #{interpolate.1} parent=11 // pred_check_branch
          %127 = sbr.rel (%p125) target = $region16
        $region15: #{interpolate.1} parent=11 // pred_region
          %s129 = ssub.s32 256, 256
          %130 = vsyncadd [#allocation6], %s129
          %s131 = sshll.u32 [#allocation5], 4
          %s132 = int_to_ptr.vmem [resolvable:$true] %s131
          %137 = dma.hbm_to_vmem [thread:$0]  %s1, 256, %s132, [#allocation6], 128, 128, 8
        $region16: #{interpolate.1} parent=11 // pred_fallthru
          _
        // Predicated region
        $region17: #{interpolate.1} parent=11 // pred_check
          %p138 = pneg %p84
        $region18: #{interpolate.1} parent=11 // pred_check_branch
          %140 = sbr.rel (%p138) target = $region20
        $region19: #{interpolate.1} parent=11 // pred_region
          %s142 = ssub.s32 512, 512
          %143 = vsyncadd [#allocation6], %s142
          %s144 = sshll.u32 [#allocation7], 4
          %s145 = int_to_ptr.vmem [resolvable:$true] %s144
          %150 = dma.hbm_to_vmem [thread:$0]  %s2, 512, %s145, [#allocation6], 128, 128, 8
        $region20: #{interpolate.1} parent=11 // pred_fallthru
          _
      $region12: #{interpolate.1} parent=5 // pred_fallthru
        _
      %p151 = scmp.lt.s32.totalorder %s16, 4
      // Predicated region
      $region21: #{interpolate.1} parent=5 // pred_check
        %p152 = pneg %p151
      $region22: #{interpolate.1} parent=5 // pred_check_branch
        %154 = sbr.rel (%p152) target = $region24
      $region23: #{interpolate.1} parent=5 // pred_region
        // Predicated region
        $region25: #{interpolate.1} parent=23 // pred_check
          %p155 = pneg %p36
        $region26: #{interpolate.1} parent=23 // pred_check_branch
          %157 = sbr.rel (%p155) target = $region28
        $region27: #{interpolate.1} parent=23 // pred_region
          %s158 = sand.u32 %s26, 1
          %s159 = scalar_lea.sflag [#allocation3], %s158
          %s160 = sand.u32 %s26, 1
          %s161 = smul.addr %s160, 32
          %s162 = scalar_lea.vmem [#allocation2], %s161
          %s163 = smul.u32 4, %s16
          %s165 = ssub.s32 512, 512
          %166 = vsyncadd %s159, %s165
          %s167 = smul.addr %s163, 128
          %s168 = scalar_lea.hbm %s0, %s167
          %s169 = sshll.u32 %s162, 4
          %s170 = int_to_ptr.vmem [resolvable:$true] %s169
          %175 = dma.hbm_to_vmem [thread:$0]  %s168, 512, %s170, %s159, 128, 128, 8
        $region28: #{interpolate.1} parent=23 // pred_fallthru
          _
      $region24: #{interpolate.1} parent=5 // pred_fallthru
        _
      %p176 = scmp.le.s32.totalorder 1, %s16
      %p177 = scmp.lt.s32.totalorder %s16, 5
      %p178 = pnand %p176, %p177
      %p179 = pneg %p178
      // Predicated region
      $region29: #{interpolate.1} parent=5 // pred_check
        _
      $region30: #{interpolate.1} parent=5 // pred_check_branch
        %181 = sbr.rel (%p178) target = $region32
      $region31: #{interpolate.1} parent=5 // pred_region
        %s182 = ssub.s32 %s16, 1
        %s183 = sand.u32 %s29, 1
        %s184 = scalar_lea.sflag [#allocation3], %s183
        %s185 = sand.u32 %s29, 1
        %s186 = smul.addr %s185, 32
        %s187 = scalar_lea.vmem [#allocation2], %s186
        // Predicated region
        $region33: #{interpolate.1} parent=31 // pred_check
          %p188 = pneg %p42
        $region34: #{interpolate.1} parent=31 // pred_check_branch
          %190 = sbr.rel (%p188) target = $region36
        $region35: #{interpolate.1} parent=31 // pred_region
          %191 = dma.done %s184, 512
        $region36: #{interpolate.1} parent=31 // pred_fallthru
          _
        // Predicated region
        $region37: #{interpolate.1} parent=31 // pred_check
          %p192 = pneg %p63
        $region38: #{interpolate.1} parent=31 // pred_check_branch
          %194 = sbr.rel (%p192) target = $region40
        $region39: #{interpolate.1} parent=31 // pred_region
          %195 = dma.done [#allocation6], 256
        $region40: #{interpolate.1} parent=31 // pred_fallthru
          _
        // Predicated region
        $region41: #{interpolate.1} parent=31 // pred_check
          %p196 = pneg %p84
        $region42: #{interpolate.1} parent=31 // pred_check_branch
          %198 = sbr.rel (%p196) target = $region44
        $region43: #{interpolate.1} parent=31 // pred_region
          %199 = dma.done [#allocation6], 512
        $region44: #{interpolate.1} parent=31 // pred_fallthru
          _
        %s200 = sand.u32 %s29, 1
        %s201 = scalar_lea.sflag [#allocation3], %s200
        %s202 = sand.u32 %s29, 1
        %s203 = smul.addr %s202, 32
        %s204 = scalar_lea.vmem [#allocation2], %s203
        %p205 = pneg %p42
        %p206 = pneg %p39
        %p207 = pneg %p63
        %p208 = pneg %p60
        %p209 = pneg %p84
        %p210 = pneg %p81
        %p211 = pneg %p110
        %p212 = pneg %p107
        %s213 = sand.u32 %s97, 1
        %s214 = scalar_lea.sflag [#allocation4], %s213
        %s215 = sand.u32 %s97, 1
        %s216 = smul.addr %s215, 64
        %s217 = scalar_lea.vmem [#allocation8], %s216
        %s218 = smul.u32 4, %s21
        %s219 = smul.u32 8, %s21
        %v220 = vld [vmem:[#allocation5] sm:$0xff]
        %v221 = vld [vmem:[#allocation5 + $0x8] sm:$0xff]
        %v222 = vld [vmem:[#allocation7] sm:$0xff]
        %v223 = vld [vmem:[#allocation7 + $0x8] sm:$0xff]
        %v224 = vld [vmem:[#allocation7 + $0x10] sm:$0xff]
        %v225 = vld [vmem:[#allocation7 + $0x18] sm:$0xff]
        %v226 = vld [vmem:[%s187] sm:$0xff]
        %v227 = vld [vmem:[%s187 + $0x8] sm:$0xff]
        %v228 = vld [vmem:[%s187 + $0x10] sm:$0xff]
        %v229 = vld [vmem:[%s187 + $0x18] sm:$0xff]
        %vm230 = vcmask 130048
        %v232 = vsel %vm230, %v226, 0
        %v235 = vsel %vm230, %v227, 0
        %v238 = vsel %vm230, %v228, 0
        %v241 = vsel %vm230, %v229, 0
        %243 = vmatprep.subr.mxu0 0.0
        %244 = vmatpush1.msra.mxu0 0.0
        %245 = vmatprep.subr.mxu0 0.0
        %246 = vmatpush1.msra.mxu0 0.0
        %247 = vmatprep.subr.mxu0 0.0
        %248 = vmatpush1.msra.mxu0 0.0
        %249 = vmatprep.subr.mxu0 0.0
        %250 = vmatpush1.msra.mxu0 0.0
        %251 = vmatprep.subr.mxu0 0.0
        %252 = vmatpush1.msra.mxu0 0.0
        %253 = vmatprep.subr.mxu0 0.0
        %254 = vmatpush1.msra.mxu0 0.0
        %255 = vmatprep.subr.mxu0 0.0
        %256 = vmatpush1.msra.mxu0 0.0
        %257 = vmatprep.subr.mxu0 0.0
        %258 = vmatpush1.msra.mxu0 0.0
        %259 = vmatprep.subr.mxu0 0.0
        %260 = vmatpush1.msra.mxu0 0.0
        %261 = vmatprep.subr.mxu0 0.0
        %262 = vmatpush1.msra.mxu0 0.0
        %263 = vmatprep.subr.mxu0 0.0
        %264 = vmatpush1.msra.mxu0 0.0
        %265 = vmatprep.subr.mxu0 0.0
        %266 = vmatpush1.msra.mxu0 0.0
        %267 = vmatprep.subr.mxu0 0.0
        %268 = vmatpush1.msra.mxu0 0.0
        %269 = vmatprep.subr.mxu0 0.0
        %270 = vmatpush1.msra.mxu0 0.0
        %271 = vmatprep.subr.mxu0 0.0
        %272 = vmatpush1.msra.mxu0 %v221
        %273 = vmatprep.subr.mxu0 0.0
        %274 = vmatpush1.msra.mxu0 %v220
        %275 = vmatprep.subr.mxu0 0.0
        %276 = vmatpush2.msra.mxu0 0.0
        %277 = vmatprep.subr.mxu0 0.0
        %278 = vmatpush2.msra.mxu0 0.0
        %279 = vmatprep.subr.mxu0 0.0
        %280 = vmatpush2.msra.mxu0 0.0
        %281 = vmatprep.subr.mxu0 0.0
        %282 = vmatpush2.msra.mxu0 0.0
        %283 = vmatprep.subr.mxu0 0.0
        %284 = vmatpush2.msra.mxu0 0.0
        %285 = vmatprep.subr.mxu0 0.0
        %286 = vmatpush2.msra.mxu0 0.0
        %287 = vmatprep.subr.mxu0 0.0
        %288 = vmatpush2.msra.mxu0 0.0
        %289 = vmatprep.subr.mxu0 0.0
        %290 = vmatpush2.msra.mxu0 0.0
        %291 = vmatprep.subr.mxu0 0.0
        %292 = vmatpush2.msra.mxu0 0.0
        %293 = vmatprep.subr.mxu0 0.0
        %294 = vmatpush2.msra.mxu0 0.0
        %295 = vmatprep.subr.mxu0 0.0
        %296 = vmatpush2.msra.mxu0 0.0
        %297 = vmatprep.subr.mxu0 0.0
        %298 = vmatpush2.msra.mxu0 0.0
        %299 = vmatprep.subr.mxu0 0.0
        %300 = vmatpush2.msra.mxu0 0.0
        %301 = vmatprep.subr.mxu0 0.0
        %302 = vmatpush2.msra.mxu0 0.0
        %303 = vmatprep.subr.mxu0 0.0
        %304 = vmatpush2.msra.mxu0 0.0
        %305 = vmatprep.subr.mxu0 0.0
        %306 = vmatpush2.msra.mxu0 0.0
        %307 = vmatprep.mubr.f32.mxu0 0.0
        %308 = vmatmul.mubr.f32.gmra.mxu0 %v232
        %v309 = vpop.f32.mrf.mxu0
        %v310 = vadd.f32 0.0, %v309
        %v311 = vpop.f32.mrf.mxu0
        %312 = vmatprep.mubr.f32.mxu0 0.0
        %313 = vmatmul.mubr.f32.gmra.mxu0 %v235
        %v314 = vpop.f32.mrf.mxu0
        %v315 = vadd.f32 0.0, %v314
        %v316 = vpop.f32.mrf.mxu0
        %317 = vmatprep.mubr.f32.mxu0 0.0
        %318 = vmatmul.mubr.f32.gmra.mxu0 %v238
        %v319 = vpop.f32.mrf.mxu0
        %v320 = vadd.f32 0.0, %v319
        %v321 = vpop.f32.mrf.mxu0
        %322 = vmatprep.mubr.f32.mxu0 0.0
        %323 = vmatmul.mubr.f32.gmra.mxu0 %v241
        %v324 = vpop.f32.mrf.mxu0
        %v325 = vadd.f32 0.0, %v324
        %v326 = vpop.f32.mrf.mxu0
        %327 = vdwg.mxu0
        %v329 = vsel %vm230, %v222, 0
        %v332 = vsel %vm230, %v223, 0
        %v335 = vsel %vm230, %v224, 0
        %v338 = vsel %vm230, %v225, 0
        %340 = vmatprep.subr.mxu0 0.0
        %341 = vmatpush1.msra.mxu0 0.0
        %342 = vmatprep.subr.mxu0 0.0
        %343 = vmatpush1.msra.mxu0 0.0
        %344 = vmatprep.subr.mxu0 0.0
        %345 = vmatpush1.msra.mxu0 0.0
        %346 = vmatprep.subr.mxu0 0.0
        %347 = vmatpush1.msra.mxu0 0.0
        %348 = vmatprep.subr.mxu0 0.0
        %349 = vmatpush1.msra.mxu0 0.0
        %350 = vmatprep.subr.mxu0 0.0
        %351 = vmatpush1.msra.mxu0 0.0
        %352 = vmatprep.subr.mxu0 0.0
        %353 = vmatpush1.msra.mxu0 0.0
        %354 = vmatprep.subr.mxu0 0.0
        %355 = vmatpush1.msra.mxu0 0.0
        %356 = vmatprep.subr.mxu0 0.0
        %357 = vmatpush1.msra.mxu0 0.0
        %358 = vmatprep.subr.mxu0 0.0
        %359 = vmatpush1.msra.mxu0 0.0
        %360 = vmatprep.subr.mxu0 0.0
        %361 = vmatpush1.msra.mxu0 0.0
        %362 = vmatprep.subr.mxu0 0.0
        %363 = vmatpush1.msra.mxu0 0.0
        %364 = vmatprep.subr.mxu0 0.0
        %365 = vmatpush1.msra.mxu0 0.0
        %366 = vmatprep.subr.mxu0 0.0
        %367 = vmatpush1.msra.mxu0 0.0
        %368 = vmatprep.subr.mxu0 0.0
        %369 = vmatpush1.msra.mxu0 %v315
        %370 = vmatprep.subr.mxu0 0.0
        %371 = vmatpush1.msra.mxu0 %v310
        %372 = vmatprep.subr.mxu0 0.0
        %373 = vmatpush2.msra.mxu0 0.0
        %374 = vmatprep.subr.mxu0 0.0
        %375 = vmatpush2.msra.mxu0 0.0
        %376 = vmatprep.subr.mxu0 0.0
        %377 = vmatpush2.msra.mxu0 0.0
        %378 = vmatprep.subr.mxu0 0.0
        %379 = vmatpush2.msra.mxu0 0.0
        %380 = vmatprep.subr.mxu0 0.0
        %381 = vmatpush2.msra.mxu0 0.0
        %382 = vmatprep.subr.mxu0 0.0
        %383 = vmatpush2.msra.mxu0 0.0
        %384 = vmatprep.subr.mxu0 0.0
        %385 = vmatpush2.msra.mxu0 0.0
        %386 = vmatprep.subr.mxu0 0.0
        %387 = vmatpush2.msra.mxu0 0.0
        %388 = vmatprep.subr.mxu0 0.0
        %389 = vmatpush2.msra.mxu0 0.0
        %390 = vmatprep.subr.mxu0 0.0
        %391 = vmatpush2.msra.mxu0 0.0
        %392 = vmatprep.subr.mxu0 0.0
        %393 = vmatpush2.msra.mxu0 0.0
        %394 = vmatprep.subr.mxu0 0.0
        %395 = vmatpush2.msra.mxu0 0.0
        %396 = vmatprep.subr.mxu0 0.0
        %397 = vmatpush2.msra.mxu0 0.0
        %398 = vmatprep.subr.mxu0 0.0
        %399 = vmatpush2.msra.mxu0 0.0
        %400 = vmatprep.subr.mxu0 0.0
        %401 = vmatpush2.msra.mxu0 0.0
        %402 = vmatprep.subr.mxu0 0.0
        %403 = vmatpush2.msra.mxu0 0.0
        %404 = vmatprep.mubr.f32.mxu0 0.0
        %405 = vmatmul.mubr.f32.gmra.mxu0 %v329
        %v406 = vpop.f32.mrf.mxu0
        %v407 = vadd.f32 0.0, %v406
        %v408 = vpop.f32.mrf.mxu0
        %409 = vmatprep.mubr.f32.mxu0 0.0
        %410 = vmatmul.mubr.f32.gmra.mxu0 %v332
        %v411 = vpop.f32.mrf.mxu0
        %v412 = vadd.f32 0.0, %v411
        %v413 = vpop.f32.mrf.mxu0
        %414 = vmatprep.mubr.f32.mxu0 0.0
        %415 = vmatmul.mubr.f32.gmra.mxu0 %v335
        %v416 = vpop.f32.mrf.mxu0
        %v417 = vadd.f32 0.0, %v416
        %v418 = vpop.f32.mrf.mxu0
        %419 = vmatprep.mubr.f32.mxu0 0.0
        %420 = vmatmul.mubr.f32.gmra.mxu0 %v338
        %v421 = vpop.f32.mrf.mxu0
        %v422 = vadd.f32 0.0, %v421
        %v423 = vpop.f32.mrf.mxu0
        %424 = vdwg.mxu0
        %vm425 = vcmask 261120
        %426 = vst.msk [vmem:[%s217] sm:$0xff] %vm425, %v407
        %427 = vst.msk [vmem:[%s217 + $0x8] sm:$0xff] %vm425, %v412
        %428 = vst.msk [vmem:[%s217 + $0x10] sm:$0xff] %vm425, %v417
        %429 = vst.msk [vmem:[%s217 + $0x18] sm:$0xff] %vm425, %v422
        %430 = vmatprep.subr.mxu0 0.0
        %431 = vmatpush1.msra.mxu0 0.0
        %432 = vmatprep.subr.mxu0 0.0
        %433 = vmatpush1.msra.mxu0 0.0
        %434 = vmatprep.subr.mxu0 0.0
        %435 = vmatpush1.msra.mxu0 0.0
        %436 = vmatprep.subr.mxu0 0.0
        %437 = vmatpush1.msra.mxu0 0.0
        %438 = vmatprep.subr.mxu0 0.0
        %439 = vmatpush1.msra.mxu0 0.0
        %440 = vmatprep.subr.mxu0 0.0
        %441 = vmatpush1.msra.mxu0 0.0
        %442 = vmatprep.subr.mxu0 0.0
        %443 = vmatpush1.msra.mxu0 0.0
        %444 = vmatprep.subr.mxu0 0.0
        %445 = vmatpush1.msra.mxu0 0.0
        %446 = vmatprep.subr.mxu0 0.0
        %447 = vmatpush1.msra.mxu0 0.0
        %448 = vmatprep.subr.mxu0 0.0
        %449 = vmatpush1.msra.mxu0 0.0
        %450 = vmatprep.subr.mxu0 0.0
        %451 = vmatpush1.msra.mxu0 0.0
        %452 = vmatprep.subr.mxu0 0.0
        %453 = vmatpush1.msra.mxu0 0.0
        %454 = vmatprep.subr.mxu0 0.0
        %455 = vmatpush1.msra.mxu0 0.0
        %456 = vmatprep.subr.mxu0 0.0
        %457 = vmatpush1.msra.mxu0 0.0
        %458 = vmatprep.subr.mxu0 0.0
        %459 = vmatpush1.msra.mxu0 %v325
        %460 = vmatprep.subr.mxu0 0.0
        %461 = vmatpush1.msra.mxu0 %v320
        %462 = vmatprep.subr.mxu0 0.0
        %463 = vmatpush2.msra.mxu0 0.0
        %464 = vmatprep.subr.mxu0 0.0
        %465 = vmatpush2.msra.mxu0 0.0
        %466 = vmatprep.subr.mxu0 0.0
        %467 = vmatpush2.msra.mxu0 0.0
        %468 = vmatprep.subr.mxu0 0.0
        %469 = vmatpush2.msra.mxu0 0.0
        %470 = vmatprep.subr.mxu0 0.0
        %471 = vmatpush2.msra.mxu0 0.0
        %472 = vmatprep.subr.mxu0 0.0
        %473 = vmatpush2.msra.mxu0 0.0
        %474 = vmatprep.subr.mxu0 0.0
        %475 = vmatpush2.msra.mxu0 0.0
        %476 = vmatprep.subr.mxu0 0.0
        %477 = vmatpush2.msra.mxu0 0.0
        %478 = vmatprep.subr.mxu0 0.0
        %479 = vmatpush2.msra.mxu0 0.0
        %480 = vmatprep.subr.mxu0 0.0
        %481 = vmatpush2.msra.mxu0 0.0
        %482 = vmatprep.subr.mxu0 0.0
        %483 = vmatpush2.msra.mxu0 0.0
        %484 = vmatprep.subr.mxu0 0.0
        %485 = vmatpush2.msra.mxu0 0.0
        %486 = vmatprep.subr.mxu0 0.0
        %487 = vmatpush2.msra.mxu0 0.0
        %488 = vmatprep.subr.mxu0 0.0
        %489 = vmatpush2.msra.mxu0 0.0
        %490 = vmatprep.subr.mxu0 0.0
        %491 = vmatpush2.msra.mxu0 0.0
        %492 = vmatprep.subr.mxu0 0.0
        %493 = vmatpush2.msra.mxu0 0.0
        %494 = vmatprep.mubr.f32.mxu0 0.0
        %495 = vmatmul.mubr.f32.gmra.mxu0 %v329
        %v496 = vpop.f32.mrf.mxu0
        %v497 = vadd.f32 0.0, %v496
        %v498 = vpop.f32.mrf.mxu0
        %499 = vmatprep.mubr.f32.mxu0 0.0
        %500 = vmatmul.mubr.f32.gmra.mxu0 %v332
        %v501 = vpop.f32.mrf.mxu0
        %v502 = vadd.f32 0.0, %v501
        %v503 = vpop.f32.mrf.mxu0
        %504 = vmatprep.mubr.f32.mxu0 0.0
        %505 = vmatmul.mubr.f32.gmra.mxu0 %v335
        %v506 = vpop.f32.mrf.mxu0
        %v507 = vadd.f32 0.0, %v506
        %v508 = vpop.f32.mrf.mxu0
        %509 = vmatprep.mubr.f32.mxu0 0.0
        %510 = vmatmul.mubr.f32.gmra.mxu0 %v338
        %v511 = vpop.f32.mrf.mxu0
        %v512 = vadd.f32 0.0, %v511
        %v513 = vpop.f32.mrf.mxu0
        %514 = vdwg.mxu0
        %515 = vst.msk [vmem:[%s217 + $0x20] sm:$0xff] %vm425, %v497
        %516 = vst.msk [vmem:[%s217 + $0x28] sm:$0xff] %vm425, %v502
        %517 = vst.msk [vmem:[%s217 + $0x30] sm:$0xff] %vm425, %v507
        %518 = vst.msk [vmem:[%s217 + $0x38] sm:$0xff] %vm425, %v512
        %s519 = sand.u32 %s97, 1
        %s520 = scalar_lea.sflag [#allocation4], %s519
        %s521 = sand.u32 %s97, 1
        %s522 = smul.addr %s521, 64
        %s523 = scalar_lea.vmem [#allocation8], %s522
        // Predicated region
        $region45: #{interpolate.1} parent=31 // pred_check
          %p524 = pneg %p107
        $region46: #{interpolate.1} parent=31 // pred_check_branch
          %526 = sbr.rel (%p524) target = $region48
        $region47: #{interpolate.1} parent=31 // pred_region
          %s527 = smul.u32 8, %s21
          %s529 = ssub.s32 1024, 1024
          %530 = vsyncadd %s520, %s529
          %s531 = smul.addr %s527, 128
          %s532 = scalar_lea.hbm %s3, %s531
          %s533 = sshll.u32 %s523, 4
          %s534 = int_to_ptr.vmem [resolvable:$true] %s533
          %539 = dma.vmem_to_hbm [thread:$0]  %s534, 1024, %s532, %s520, 128, 128, 8
        $region48: #{interpolate.1} parent=31 // pred_fallthru
          _
      $region32: #{interpolate.1} parent=5 // pred_fallthru
        _
      %p540 = scmp.le.s32.totalorder 2, %s16
      // Predicated region
      $region49: #{interpolate.1} parent=5 // pred_check
        %p541 = pneg %p540
      $region50: #{interpolate.1} parent=5 // pred_check_branch
        %543 = sbr.rel (%p541) target = $region52
      $region51: #{interpolate.1} parent=5 // pred_region
        %s544 = ssub.s32 %s16, 2
        // Predicated region
        $region53: #{interpolate.1} parent=51 // pred_check
          %p545 = pneg %p113
        $region54: #{interpolate.1} parent=51 // pred_check_branch
          %547 = sbr.rel (%p545) target = $region56
        $region55: #{interpolate.1} parent=51 // pred_region
          %s548 = sand.u32 %s98, 1
          %s549 = scalar_lea.sflag [#allocation4], %s548
          %s550 = sand.u32 %s98, 1
          %s551 = smul.addr %s550, 64
          %s552 = scalar_lea.vmem [#allocation8], %s551
          %553 = dma.done %s549, 1024
        $region56: #{interpolate.1} parent=51 // pred_fallthru
          _
      $region52: #{interpolate.1} parent=5 // pred_fallthru
        _
    $region6: #{interpolate.1} parent=1 // loop_footer
      %s20 = sadd.s32 1, %s16
    $region7: #{interpolate.1} parent=1 // loop_footer_branch
      %15 = sbr.rel target = $region3
    $region8: #{interpolate.1} parent=1 // loop_exit
      _
    %554 = vsyncpa [#allocation3], 1
    %s555 = scalar_lea.sflag [#allocation3], 1
    %556 = vsyncpa %s555, 1
    %557 = vsyncpa [#allocation6], 1
    %558 = vsyncpa [#allocation4], 1
    %s559 = scalar_lea.sflag [#allocation4], 1
    %560 = vsyncpa %s559, 1

</llo_original>
